<compile_context>
chip_gen: v7x
topology: tpu7x:2x2x1
jax: 0.10.0
libtpu: 0.0.40
codegen_flags: <defaults>
</compile_context>

<pallas_src>
import functools

import jax
import jax.numpy as jnp
from jax.experimental import pallas as pl
from jax.experimental.pallas import tpu as pltpu

_LANES = 128
_SUBLANES = 8
_TILE_ROWS = 4096              # rows per grid step on the large-input path
_SINGLE_BLOCK_MAX_ROWS = 2048  # <= 1 MiB / input (f32) -> do it in one block


def _fold_to_vreg(x):
    # (R, 128) -> (8, 128): leading-axis reduction = vreg-wise VALU adds only
    # (no cross-lane / XLU work, no large accumulator traffic).
    return jnp.sum(x.reshape(-1, _SUBLANES, _LANES), axis=0)


def _dice_single_block_kernel(eps, yp_ref, yt_ref, out_ref):
    # Whole problem resident in VMEM: one step, no accumulator, no pipeline.
    yp = yp_ref[...].astype(jnp.float32)
    yt = yt_ref[...].astype(jnp.float32)
    num = 2.0 * jnp.sum(yt * yp) + eps
    den = jnp.sum(yt * yt + yp * yp) + eps
    out_ref[0] = 1.0 - num / den


def _dice_tiled_kernel(eps, total_rows, ragged, yp_ref, yt_ref, out_ref,
                       acc_num, acc_den):
    i = pl.program_id(0)
    nsteps = pl.num_programs(0)

    @pl.when(i == 0)
    def _():
        acc_num[...] = jnp.zeros_like(acc_num)
        acc_den[...] = jnp.zeros_like(acc_den)

    yp = yp_ref[...].astype(jnp.float32)
    yt = yt_ref[...].astype(jnp.float32)

    def accumulate(p, t):
        acc_num[...] += _fold_to_vreg(t * p)
        acc_den[...] += _fold_to_vreg(t * t + p * p)

    if ragged:
        # Only the tail tile of the cdiv() grid overruns the array; its
        # out-of-bounds rows contain unspecified data, so zero them before
        # they reach the products.  Non-tail steps take the unmasked path.
        @pl.when(i == nsteps - 1)
        def _():
            row = jax.lax.broadcasted_iota(jnp.int32, (_TILE_ROWS, 1), 0)
            valid = total_rows - i * _TILE_ROWS
            keep = row < valid
            accumulate(jnp.where(keep, yp, 0.0), jnp.where(keep, yt, 0.0))

        @pl.when(i < nsteps - 1)
        def _():
            accumulate(yp, yt)
    else:
        accumulate(yp, yt)

    @pl.when(i == nsteps - 1)
    def _():
        # Single cross-lane (XLU) reduce + scalar write, once per call.
        num = 2.0 * jnp.sum(acc_num[...]) + eps
        den = jnp.sum(acc_den[...]) + eps
        out_ref[0] = 1.0 - num / den


def _to_rows(x):
    # Keep the input dtype in HBM (bf16 stays bf16); the f32 cast is in-kernel.
    flat = x.reshape(-1)
    n = flat.shape[0]
    rows = pl.cdiv(n, _SUBLANES * _LANES) * _SUBLANES
    total = rows * _LANES
    if total != n:
        # Zero padding cannot perturb any of the sums.
        # TODO(synk): element-level in-kernel masking would also remove this
        # (whole-tensor-copying) pad for totals not divisible by 8*128.
        flat = jnp.pad(flat, (0, total - n))
    return flat.reshape(rows, _LANES)


def soft_dice_loss(y_pred, y_true, epsilon=1e-5):
    assert y_pred.shape == y_true.shape
    eps = float(epsilon)  # plain Python float -> becomes a jaxpr literal

    yp2d = _to_rows(y_pred)
    yt2d = _to_rows(y_true)
    rows = yp2d.shape[0]

    if rows <= _SINGLE_BLOCK_MAX_ROWS:
        # Small / benchmarked path: whole arrays as a single VMEM block.
        out = pl.pallas_call(
            functools.partial(_dice_single_block_kernel, eps),
            out_shape=jax.ShapeDtypeStruct((1,), jnp.float32),
            in_specs=[
                pl.BlockSpec(memory_space=pltpu.MemorySpace.VMEM),
                pl.BlockSpec(memory_space=pltpu.MemorySpace.VMEM),
            ],
            out_specs=pl.BlockSpec(memory_space=pltpu.MemorySpace.SMEM),
        )(yp2d, yt2d)
        return out[0]

    # Large-input path: 4096-row (2 MiB f32) streaming tiles, tiny (8,128)
    # accumulators, epilogue-only cross-lane reduce.
    grid = (pl.cdiv(rows, _TILE_ROWS),)
    ragged = (rows % _TILE_ROWS) != 0
    n_elems = rows * _LANES
    bytes_accessed = n_elems * (jnp.dtype(yp2d.dtype).itemsize
                                + jnp.dtype(yt2d.dtype).itemsize)
    # TODO(synk): on v7x, split the row range over the 2 TensorCores with a
    # leading "parallel" grid axis writing per-core partial (num, den) sums and
    # combine them in the wrapper (~2x HBM bandwidth on large inputs).
    out = pl.pallas_call(
        functools.partial(_dice_tiled_kernel, eps, rows, ragged),
        out_shape=jax.ShapeDtypeStruct((1,), jnp.float32),
        grid_spec=pltpu.PrefetchScalarGridSpec(
            num_scalar_prefetch=0,
            grid=grid,
            in_specs=[
                pl.BlockSpec((_TILE_ROWS, _LANES), lambda i: (i, 0)),
                pl.BlockSpec((_TILE_ROWS, _LANES), lambda i: (i, 0)),
            ],
            out_specs=pl.BlockSpec(memory_space=pltpu.MemorySpace.SMEM),
            scratch_shapes=[
                pltpu.VMEM((_SUBLANES, _LANES), jnp.float32),
                pltpu.VMEM((_SUBLANES, _LANES), jnp.float32),
            ],
        ),
        compiler_params=pltpu.CompilerParams(
            dimension_semantics=("arbitrary",),
        ),
        cost_estimate=pl.CostEstimate(
            flops=5 * n_elems, transcendentals=0,
            bytes_accessed=bytes_accessed),
    )(yp2d, yt2d)
    return out[0]


def _reference(y_pred, y_true, epsilon=1e-5):
    y_pred = y_pred.astype(jnp.float32)
    y_true = y_true.astype(jnp.float32)
    num = 2.0 * jnp.sum(y_true * y_pred)
    den = jnp.sum(y_true**2) + jnp.sum(y_pred**2)
    return 1.0 - (num + epsilon) / (den + epsilon)


if __name__ == "__main__":
    key = jax.random.PRNGKey(0)
    k1, k2, k3, k4 = jax.random.split(key, 4)

    # Benchmarked NCHW case: sigmoid-ish preds, binary targets -> single-block path.
    y_pred = jax.nn.sigmoid(jax.random.normal(k1, (2, 4, 16, 16), jnp.float32))
    y_true = (jax.random.uniform(k2, (2, 4, 16, 16)) > 0.5).astype(jnp.float32)
    loss = soft_dice_loss(y_pred, y_true)
    jax.block_until_ready(loss)
    ref = _reference(y_pred, y_true)
    assert jnp.allclose(loss, ref, atol=1e-5, rtol=1e-5), (loss, ref)

    # Tiled path, row count divisible by the tile (bf16 stays bf16 in HBM).
    bp = jax.nn.sigmoid(
        jax.random.normal(k3, (8, 8, 128, 128), jnp.float32)).astype(jnp.bfloat16)
    bt = (jax.random.uniform(k4, (8, 8, 128, 128)) > 0.5).astype(jnp.bfloat16)
    loss_b = soft_dice_loss(bp, bt)
    jax.block_until_ready(loss_b)
    ref_b = _reference(bp, bt)
    assert jnp.allclose(loss_b, ref_b, atol=1e-4, rtol=1e-4), (loss_b, ref_b)

    # Tiled path, ragged row count (exercises the in-kernel tail mask).
    rp = jax.nn.sigmoid(jax.random.normal(k3, (2, 3, 353, 257), jnp.float32))
    rt = (jax.random.uniform(k4, (2, 3, 353, 257)) > 0.5).astype(jnp.float32)
    loss_r = soft_dice_loss(rp, rt)
    jax.block_until_ready(loss_r)
    ref_r = _reference(rp, rt)
    assert jnp.allclose(loss_r, ref_r, atol=1e-4, rtol=1e-4), (loss_r, ref_r)

    print("KERNEL_OK")
</pallas_src>

<mosaic_0001>
module attributes {stable_mosaic.version = 11 : i64} {
  func.func @_dice_single_block_kernel(%arg0: memref<16x128xf32, #tpu.memory_space<vmem>>, %arg1: memref<16x128xf32, #tpu.memory_space<vmem>>, %arg2: memref<1xf32, #tpu.memory_space<smem>>) attributes {dimension_semantics = [], scalar_prefetch = 0 : i64, scratch_operands = 0 : i64, tpu.core_type = #tpu.core_type<tc>} {
    %c0 = arith.constant 0 : index
    %c0_0 = arith.constant 0 : index
    %0 = vector.load %arg0[%c0, %c0_0] : memref<16x128xf32, #tpu.memory_space<vmem>>, vector<16x128xf32>
    %c0_1 = arith.constant 0 : index
    %c0_2 = arith.constant 0 : index
    %1 = vector.load %arg1[%c0_1, %c0_2] : memref<16x128xf32, #tpu.memory_space<vmem>>, vector<16x128xf32>
    %2 = arith.mulf %1, %0 : vector<16x128xf32>
    %3 = vector.shape_cast %2 : vector<16x128xf32> to vector<1x16x128xf32>
    %cst = arith.constant dense<0.000000e+00> : vector<1xf32>
    %4 = vector.multi_reduction <add>, %3, %cst [1, 2] : vector<1x16x128xf32> to vector<1xf32>
    %5 = vector.shape_cast %4 : vector<1xf32> to vector<1x1x1xf32>
    %6 = vector.extract %5[0, 0, 0] : f32 from vector<1x1x1xf32>
    %cst_3 = arith.constant 2.000000e+00 : f32
    %7 = arith.mulf %cst_3, %6 : f32
    %cst_4 = arith.constant 9.99999974E-6 : f32
    %8 = arith.addf %7, %cst_4 : f32
    %9 = arith.mulf %1, %1 : vector<16x128xf32>
    %10 = arith.mulf %0, %0 : vector<16x128xf32>
    %11 = arith.addf %9, %10 : vector<16x128xf32>
    %12 = vector.shape_cast %11 : vector<16x128xf32> to vector<1x16x128xf32>
    %cst_5 = arith.constant dense<0.000000e+00> : vector<1xf32>
    %13 = vector.multi_reduction <add>, %12, %cst_5 [1, 2] : vector<1x16x128xf32> to vector<1xf32>
    %14 = vector.shape_cast %13 : vector<1xf32> to vector<1x1x1xf32>
    %15 = vector.extract %14[0, 0, 0] : f32 from vector<1x1x1xf32>
    %cst_6 = arith.constant 9.99999974E-6 : f32
    %16 = arith.addf %15, %cst_6 : f32
    %17 = arith.divf %8, %16 : f32
    %cst_7 = arith.constant 1.000000e+00 : f32
    %18 = arith.subf %cst_7, %17 : f32
    %c0_8 = arith.constant 0 : index
    %19 = memref.load %arg2[%c0_8] : memref<1xf32, #tpu.memory_space<smem>>
    memref.store %18, %arg2[%c0_8] : memref<1xf32, #tpu.memory_space<smem>>
    return
  }
}

</mosaic_0001>

<llo_original>
// kernel: tpu_custom_call.1
$region0: #{tpu_custom_call.1}
  #allocation0 [shape = 'u32[]', space=smem, size = 0x4, offset = 0x4, fixed_abs, tag = 'smem constant byte address 0x4 - core index']
  #allocation1 [shape = 'u32[144,128]{1,0:T(1,128)}', space=vmem, size = 0x12000, scoped, tag = 'internal scratch']
  %s0 = inlined_call_operand.hbm [shape: f32[16,128], index: 0, kind: input, shape index: {}]
  %s1 = inlined_call_operand.hbm [shape: f32[16,128], index: 1, kind: input, shape index: {}]
  %s2 = inlined_call_operand.hbm [shape: f32[1], index: 2, kind: output, shape index: {}]
  %s3 = sld [smem:[#allocation0]]
  $region26: #{tpu_custom_call.1} parent=0
    _
  %s5 = ssub.s32 1, %s3
  %s6 = scalar_select 0, %s5, %s3
  $region1: #{tpu_custom_call.1} parent=0
    #allocation2 [shape = 'u8[8192]{0}', space=vmem, size = 0x2000, scoped, tag = 'input window, operand 0, single buffered']
    #allocation3 [shape = 's32[1]{0}', space=sflag, size = 0x4, scoped, tag = 'scoped memory for tpu_custom_call.1']
    #allocation4 [shape = 's32[1]{0}', space=sflag, size = 0x4, scoped, tag = 'scoped memory for tpu_custom_call.1']
    #allocation5 [shape = 'u8[8192]{0}', space=vmem, size = 0x2000, scoped, tag = 'input window, operand 1, single buffered']
    #allocation6 [shape = 's32[1]{0}', space=sflag, size = 0x4, scoped, tag = 'scoped memory for tpu_custom_call.1']
    #allocation7 [shape = 'u8[512]{0}', space=smem, size = 0x200, scoped, tag = 'output window, operand 0, single buffered']
    %7 = vsyncpa [#allocation3], 0
    %8 = vsyncpa [#allocation6], 0
    %9 = vsyncpa [#allocation4], 0
    // Predicated region
    $region2: #{tpu_custom_call.1} parent=1 // pred_check
      _
    $region3: #{tpu_custom_call.1} parent=1 // pred_check_branch
      %11 = sbr.rel (0) target = $region5
    $region4: #{tpu_custom_call.1} parent=1 // pred_region
      %s13 = ssub.s32 256, 256
      %14 = vsyncadd [#allocation3], %s13
      %s15 = sshll.u32 [#allocation2], 4
      %s16 = int_to_ptr.vmem [resolvable:$true] %s15
      %21 = dma.hbm_to_vmem [thread:$0]  %s0, 256, %s16, [#allocation3], 128, 128, 8
    $region5: #{tpu_custom_call.1} parent=1 // pred_fallthru
      _
    // Predicated region
    $region6: #{tpu_custom_call.1} parent=1 // pred_check
      _
    $region7: #{tpu_custom_call.1} parent=1 // pred_check_branch
      %23 = sbr.rel (0) target = $region9
    $region8: #{tpu_custom_call.1} parent=1 // pred_region
      %s25 = ssub.s32 256, 256
      %26 = vsyncadd [#allocation6], %s25
      %s27 = sshll.u32 [#allocation5], 4
      %s28 = int_to_ptr.vmem [resolvable:$true] %s27
      %33 = dma.hbm_to_vmem [thread:$0]  %s1, 256, %s28, [#allocation6], 128, 128, 8
    $region9: #{tpu_custom_call.1} parent=1 // pred_fallthru
      _
    // Predicated region
    $region10: #{tpu_custom_call.1} parent=1 // pred_check
      _
    $region11: #{tpu_custom_call.1} parent=1 // pred_check_branch
      %35 = sbr.rel (0) target = $region13
    $region12: #{tpu_custom_call.1} parent=1 // pred_region
      %36 = dma.done [#allocation3], 256
    $region13: #{tpu_custom_call.1} parent=1 // pred_fallthru
      _
    // Predicated region
    $region14: #{tpu_custom_call.1} parent=1 // pred_check
      _
    $region15: #{tpu_custom_call.1} parent=1 // pred_check_branch
      %38 = sbr.rel (0) target = $region17
    $region16: #{tpu_custom_call.1} parent=1 // pred_region
      %39 = dma.done [#allocation6], 256
    $region17: #{tpu_custom_call.1} parent=1 // pred_fallthru
      _
    %v40 = vld [vmem:[#allocation2] sm:$0xff]
    %v41 = vld [vmem:[#allocation2 + $0x8] sm:$0xff]
    %v42 = vld [vmem:[#allocation5] sm:$0xff]
    %v43 = vld [vmem:[#allocation5 + $0x8] sm:$0xff]
    %v44 = vmul.f32 %v42, %v40
    %v45 = vmul.f32 %v43, %v41
    %v46 = vadd.f32 %v44, %v45
    %47 = vadd.xlane.f32.xlu0 %v46
    %v48 = vpop.xlane.xlu0 %47
    %v49 = vrot.slane %v48, 4
    %v50 = vadd.f32 %v48, %v49
    %v51 = vrot.slane %v50, 2
    %v52 = vadd.f32 %v50, %v51
    %v53 = vrot.slane %v52, 1
    %v54 = vadd.f32 %v52, %v53
    %s55 = vtos %v54
    %s56 = smul.f32 %s55, 2.0
    %s57 = sadd.f32 %s56, 1e-05
    %v58 = vmul.f32 %v42, %v42
    %v59 = vmul.f32 %v43, %v43
    %v60 = vmul.f32 %v40, %v40
    %v61 = vmul.f32 %v41, %v41
    %v62 = vadd.f32 %v58, %v60
    %v63 = vadd.f32 %v59, %v61
    %v64 = vadd.f32 %v62, %v63
    %65 = vadd.xlane.f32.xlu0 %v64
    %v66 = vpop.xlane.xlu0 %65
    %v67 = vrot.slane %v66, 4
    %v68 = vadd.f32 %v66, %v67
    %v69 = vrot.slane %v68, 2
    %v70 = vadd.f32 %v68, %v69
    %v71 = vrot.slane %v70, 1
    %v72 = vadd.f32 %v70, %v71
    %s73 = vtos %v72
    %s74 = sadd.f32 %s73, 1e-05
    %v75 = vstv %s74
    %v76 = vrcp.pop %v75
    %s77 = vtos %v76
    %s78 = smul.f32 %s57, %s77
    %s79 = ssub.f32 1.0, %s78
    %s80 = scalar_lea.smem [#allocation7], 0
    %81 = sst [smem:[%s80]] %s79
    // Predicated region
    $region18: #{tpu_custom_call.1} parent=1 // pred_check
      _
    $region19: #{tpu_custom_call.1} parent=1 // pred_check_branch
      %83 = sbr.rel (0) target = $region21
    $region20: #{tpu_custom_call.1} parent=1 // pred_region
      %s85 = ssub.s32 16, 16
      %86 = vsyncadd [#allocation4], %s85
      %89 = dma.smem_to_hbm [#allocation7], 16, %s2, [#allocation4]
    $region21: #{tpu_custom_call.1} parent=1 // pred_fallthru
      _
    // Predicated region
    $region22: #{tpu_custom_call.1} parent=1 // pred_check
      _
    $region23: #{tpu_custom_call.1} parent=1 // pred_check_branch
      %91 = sbr.rel (0) target = $region25
    $region24: #{tpu_custom_call.1} parent=1 // pred_region
      %92 = dma.done [#allocation4], 16
    $region25: #{tpu_custom_call.1} parent=1 // pred_fallthru
      _
    %93 = sfence
    %94 = vsyncpa [#allocation3], 1
    %95 = vsyncpa [#allocation6], 1
    %96 = vsyncpa [#allocation4], 1

</llo_original>
